<compile_context>
chip_gen: v7x
topology: tpu7x:2x2x1
jax: 0.10.0
libtpu: 0.0.40
codegen_flags: <defaults>
</compile_context>

<pallas_src>
import functools

import jax
import jax.numpy as jnp
from jax.experimental import pallas as pl
from jax.experimental.pallas import tpu as pltpu

PRODUCT_VECTOR_SIZE = 6
USER_VECTOR_SIZE = 8
ENC_IN = USER_VECTOR_SIZE + PRODUCT_VECTOR_SIZE   # 14  (packed [user | product])
ENC_OUT = 128                                     # concat of the two 64-wide branches
H1 = 64
H2 = 32
N_CLASSES = 2
BN_EPS = 1e-5
LEAKY_SLOPE = 0.5


def _leaky_relu(x, slope=LEAKY_SLOPE):
    return jnp.where(x > 0, x, slope * x)


def _round_up(n, m):
    return ((n + m - 1) // m) * m


def _device_config():
    """Returns (batch-tile cap, min #tiles wanted, vmem_limit_bytes or None)."""
    try:
        kind = jax.devices()[0].device_kind.lower()
    except Exception:
        kind = ""
    if "v7" in kind:
        # 64 MiB physical VMEM but only ~4 KB/row live, so 2048-row tiles are
        # ~10 MiB: the default 32 MiB scoped limit is plenty.  Want >= 2 tiles
        # so the (parallel) batch axis shards across both TensorCores.
        return 2048, 2, None
    if "v6" in kind:
        # 128 MiB physical; bigger tiles amortize the ~0.35us/step overhead.
        return 4096, 1, 64 << 20
    # v5e (and anything else): scoped-VMEM default is only 16 MiB, so raise
    # the limit explicitly even at 2048-row tiles (cheap insurance).
    return 2048, 1, 64 << 20


def _batch_tile(batch, cap, want_tiles):
    tb = min(cap, _round_up(batch, 8))
    if want_tiles > 1:
        split = _round_up(-(-batch // want_tiles), 8)   # ceil-div, rounded to 8
        tb = min(tb, max(split, 8))
    return tb


# ---------------------------------------------------------------------------
# Kernel 1: fused encoder + hidden layers + per-tile BatchNorm partial stats
# ---------------------------------------------------------------------------
def _encode_kernel(x_ref, wenc_ref, benc_ref, w1_ref, b1_ref, w2_ref, b2_ref,
                   h2_ref, sum_ref, sq_ref, *, batch, tile, mask_last):
    i = pl.program_id(0)

    # Fused branch encoders: packed [user|product] @ block-diag(14,128).
    x = x_ref[...].astype(jnp.bfloat16)
    h = _leaky_relu(
        jnp.dot(x, wenc_ref[...], preferred_element_type=jnp.float32)
        + benc_ref[...])

    # hidden_layer_1 on the (already lane-concatenated) 128-wide activation.
    h = _leaky_relu(
        jnp.dot(h.astype(jnp.bfloat16), w1_ref[...],
                preferred_element_type=jnp.float32) + b1_ref[...])

    # hidden_layer_2.
    h = _leaky_relu(
        jnp.dot(h.astype(jnp.bfloat16), w2_ref[...],
                preferred_element_type=jnp.float32) + b2_ref[...])

    # bf16 store halves the dominant HBM term (h2 write here + read in head).
    h2_ref[...] = h.astype(jnp.bfloat16)

    # Per-tile BatchNorm partial statistics (combined host-side), computed
    # from the pre-cast f32 `h`.  Only the last tile can contain padded rows,
    # so the masking work is gated to it.
    def _write_stats(hv):
        sum_ref[...] = jnp.sum(hv, axis=0, keepdims=True).reshape(1, 1, H2)
        sq_ref[...] = jnp.sum(hv * hv, axis=0, keepdims=True).reshape(1, 1, H2)

    if mask_last:
        last = pl.num_programs(0) - 1

        @pl.when(i == last)
        def _():
            row = i * tile + jax.lax.broadcasted_iota(jnp.int32, h.shape, 0)
            _write_stats(jnp.where(row < batch, h, 0.0))

        @pl.when(i != last)
        def _():
            _write_stats(h)
    else:
        _write_stats(h)


# ---------------------------------------------------------------------------
# Kernel 2: folded (BN affine + out layer + 2-class softmax) head
# ---------------------------------------------------------------------------
def _head_kernel(h2_ref, wd_ref, bd_ref, out_ref):
    # d = logit1 - logit0 with BN scale/shift already folded into (wd, bd).
    d = (jnp.dot(h2_ref[...], wd_ref[...], preferred_element_type=jnp.float32)
         + bd_ref[...])
    # softmax over 2 classes == sigmoid of the logit difference (EUP path).
    p1 = pl.reciprocal(1.0 + jnp.exp(-d), approx=True)
    lane = jax.lax.broadcasted_iota(jnp.int32, (d.shape[0], N_CLASSES), 1)
    out_ref[...] = jnp.where(lane == 0, 1.0 - p1, p1)   # single store


# ---------------------------------------------------------------------------
# Wrapper
# ---------------------------------------------------------------------------
def neural_network_forward(product_vector, user_vector, params,
                           user_desc_vector=None, product_desc_vector=None):
    """product_vector: (B, 6) f32, user_vector: (B, 8) f32 -> (B, 2) f32."""
    # Present in the PyTorch forward signature but unused by its body.
    del user_desc_vector, product_desc_vector

    B = product_vector.shape[0]
    cap, want_tiles, vmem_limit = _device_config()
    TB = _batch_tile(B, cap, want_tiles)
    B_pad = _round_up(B, TB)
    ntiles = B_pad // TB

    cp_kwargs = {}
    if vmem_limit is not None:
        cp_kwargs["vmem_limit_bytes"] = vmem_limit

    # --- host-side layout plumbing (free) ----------------------------------
    # Pack [user | product] -> (B, 14); zero-pad the batch to a tile multiple.
    x = jnp.concatenate([user_vector, product_vector], axis=1).astype(jnp.float32)
    if B_pad != B:
        x = jnp.pad(x, ((0, B_pad - B), (0, 0)))

    # Block-diagonal fused encoder weight: [[wu, 0], [0, wm]] -> (14, 128).
    wenc = jnp.zeros((ENC_IN, ENC_OUT), jnp.float32)
    wenc = wenc.at[:USER_VECTOR_SIZE, :64].set(params["wu"])
    wenc = wenc.at[USER_VECTOR_SIZE:, 64:].set(params["wm"])
    wenc = wenc.astype(jnp.bfloat16)
    benc = jnp.concatenate([params["bu"], params["bm"]], axis=1)   # (1, 128)

    w1 = params["w1"].astype(jnp.bfloat16)   # (128, 64)
    w2 = params["w2"].astype(jnp.bfloat16)   # (64, 32)

    repl2 = lambda i: (0, 0)
    tile_map = lambda i: (i, 0)
    part_map = lambda i: (i, 0, 0)

    # --- kernel 1: encoder + hidden layers + per-tile BN partials -----------
    enc = functools.partial(_encode_kernel, batch=B, tile=TB,
                            mask_last=(B_pad != B))
    flops1 = 2 * B_pad * (ENC_IN * ENC_OUT + ENC_OUT * H1 + H1 * H2)
    bytes1 = (B_pad * ENC_IN * 4 + B_pad * H2 * 2
              + ntiles * 2 * H2 * 4
              + (ENC_IN * ENC_OUT + ENC_OUT * H1 + H1 * H2) * 2
              + (ENC_OUT + H1 + H2) * 4)
    h2, sum_p, sq_p = pl.pallas_call(
        enc,
        grid=(ntiles,),
        in_specs=[
            pl.BlockSpec((TB, ENC_IN), tile_map),
            pl.BlockSpec((ENC_IN, ENC_OUT), repl2),
            pl.BlockSpec((1, ENC_OUT), repl2),
            pl.BlockSpec((ENC_OUT, H1), repl2),
            pl.BlockSpec((1, H1), repl2),
            pl.BlockSpec((H1, H2), repl2),
            pl.BlockSpec((1, H2), repl2),
        ],
        out_specs=[
            pl.BlockSpec((TB, H2), tile_map),
            pl.BlockSpec((1, 1, H2), part_map),    # per-tile partial sum
            pl.BlockSpec((1, 1, H2), part_map),    # per-tile partial sum-of-squares
        ],
        out_shape=[
            jax.ShapeDtypeStruct((B_pad, H2), jnp.bfloat16),
            jax.ShapeDtypeStruct((ntiles, 1, H2), jnp.float32),
            jax.ShapeDtypeStruct((ntiles, 1, H2), jnp.float32),
        ],
        compiler_params=pltpu.CompilerParams(
            dimension_semantics=("parallel",), **cp_kwargs),
        cost_estimate=pl.CostEstimate(
            flops=flops1, transcendentals=0, bytes_accessed=bytes1),
    )(x, wenc, benc, w1, params["b1"], w2, params["b2"])

    # --- tiny O(32) BN finalize; fold BN + out layer + class difference -----
    s = jnp.sum(sum_p, axis=0)                           # (1, 32)
    sq = jnp.sum(sq_p, axis=0)                           # (1, 32)
    mean = s / B
    var = jnp.maximum(sq / B - mean * mean, 0.0)         # biased variance
    inv_std = jax.lax.rsqrt(var + BN_EPS)
    scale = params["bng"] * inv_std                      # (1, 32)
    shift = params["bnb"] - mean * scale                 # (1, 32)
    wo_f = scale.reshape(H2, 1) * params["wo"]           # BN folded into out layer
    bo_f = shift @ params["wo"] + params["bo"]           # (1, 2)
    wd = (wo_f[:, 1:2] - wo_f[:, 0:1]).astype(jnp.bfloat16)   # (32, 1)
    bd = bo_f[:, 1:2] - bo_f[:, 0:1]                           # (1, 1) f32

    # --- kernel 2: folded head (matmul column + sigmoid) --------------------
    flops2 = 2 * B_pad * H2 + 4 * B_pad
    bytes2 = B_pad * H2 * 2 + B_pad * N_CLASSES * 4 + H2 * 2 + 4
    out = pl.pallas_call(
        _head_kernel,
        grid=(ntiles,),
        in_specs=[
            pl.BlockSpec((TB, H2), tile_map),
            pl.BlockSpec((H2, 1), repl2),
            pl.BlockSpec((1, 1), repl2),
        ],
        out_specs=pl.BlockSpec((TB, N_CLASSES), tile_map),
        out_shape=jax.ShapeDtypeStruct((B_pad, N_CLASSES), jnp.float32),
        compiler_params=pltpu.CompilerParams(
            dimension_semantics=("parallel",), **cp_kwargs),
        cost_estimate=pl.CostEstimate(
            flops=flops2, transcendentals=B_pad, bytes_accessed=bytes2),
    )(h2, wd, bd)

    return out[:B]


def init_params(key):
    """Deterministic init; Linear weights stored as (in, out)."""
    ks = jax.random.split(key, 10)

    def linear(kw, kb, fan_in, fan_out):
        bound = 1.0 / jnp.sqrt(fan_in)
        w = jax.random.uniform(kw, (fan_in, fan_out), jnp.float32, -bound, bound)
        b = jax.random.uniform(kb, (1, fan_out), jnp.float32, -bound, bound)
        return w, b

    wu, bu = linear(ks[0], ks[1], USER_VECTOR_SIZE, 64)
    wm, bm = linear(ks[2], ks[3], PRODUCT_VECTOR_SIZE, 64)
    w1, b1 = linear(ks[4], ks[5], 128, 64)
    w2, b2 = linear(ks[6], ks[7], 64, 32)
    wo, bo = linear(ks[8], ks[9], 32, 2)
    return {
        "wu": wu, "bu": bu,
        "wm": wm, "bm": bm,
        "w1": w1, "b1": b1,
        "w2": w2, "b2": b2,
        "bng": jnp.ones((1, 32), jnp.float32),   # BatchNorm weight (gamma)
        "bnb": jnp.zeros((1, 32), jnp.float32),  # BatchNorm bias   (beta)
        "wo": wo, "bo": bo,
    }


if __name__ == "__main__":
    key = jax.random.PRNGKey(0)
    k_pv, k_uv, k_ud, k_pd, k_params = jax.random.split(key, 5)

    B = 8
    product_vector = jax.random.normal(k_pv, (B, PRODUCT_VECTOR_SIZE), jnp.float32)
    user_vector = jax.random.normal(k_uv, (B, USER_VECTOR_SIZE), jnp.float32)
    # Present in the PyTorch forward signature but unused by its body:
    user_desc_vector = jax.random.normal(k_ud, (B, USER_VECTOR_SIZE), jnp.float32)
    product_desc_vector = jax.random.normal(k_pd, (B, PRODUCT_VECTOR_SIZE), jnp.float32)

    params = init_params(k_params)

    out = neural_network_forward(product_vector, user_vector, params,
                                 user_desc_vector, product_desc_vector)
    out = jax.block_until_ready(out)

    assert out.shape == (B, 2)
    assert bool(jnp.all(jnp.isfinite(out)))
    # softmax rows sum to 1
    assert bool(jnp.allclose(jnp.sum(out, axis=-1), 1.0, atol=1e-5))
    print("KERNEL_OK")
</pallas_src>

<mosaic_0001>
module attributes {stable_mosaic.version = 11 : i64} {
  func.func @_encode_kernel(%arg0: i32, %arg1: memref<8x14xf32, #tpu.memory_space<vmem>>, %arg2: memref<14x128xbf16, #tpu.memory_space<vmem>>, %arg3: memref<1x128xf32, #tpu.memory_space<vmem>>, %arg4: memref<128x64xbf16, #tpu.memory_space<vmem>>, %arg5: memref<1x64xf32, #tpu.memory_space<vmem>>, %arg6: memref<64x32xbf16, #tpu.memory_space<vmem>>, %arg7: memref<1x32xf32, #tpu.memory_space<vmem>>, %arg8: memref<8x32xbf16, #tpu.memory_space<vmem>>, %arg9: memref<1x1x32xf32, #tpu.memory_space<vmem>>, %arg10: memref<1x1x32xf32, #tpu.memory_space<vmem>>) attributes {dimension_semantics = [#tpu.dimension_semantics<parallel>], iteration_bounds = array<i64: 1>, scalar_prefetch = 0 : i64, scratch_operands = 0 : i64, tpu.core_type = #tpu.core_type<tc>, window_params = [{transform_indices = @transform_0, window_bounds = array<i64: 8, 14>}, {pipeline_mode = #tpu.pipeline_mode<synchronous>, transform_indices = @transform_1, window_bounds = array<i64: 14, 128>}, {pipeline_mode = #tpu.pipeline_mode<synchronous>, transform_indices = @transform_2, window_bounds = array<i64: 1, 128>}, {pipeline_mode = #tpu.pipeline_mode<synchronous>, transform_indices = @transform_3, window_bounds = array<i64: 128, 64>}, {pipeline_mode = #tpu.pipeline_mode<synchronous>, transform_indices = @transform_4, window_bounds = array<i64: 1, 64>}, {pipeline_mode = #tpu.pipeline_mode<synchronous>, transform_indices = @transform_5, window_bounds = array<i64: 64, 32>}, {pipeline_mode = #tpu.pipeline_mode<synchronous>, transform_indices = @transform_6, window_bounds = array<i64: 1, 32>}, {transform_indices = @transform_7, window_bounds = array<i64: 8, 32>}, {transform_indices = @transform_8, window_bounds = array<i64: 1, 1, 32>}, {transform_indices = @transform_9, window_bounds = array<i64: 1, 1, 32>}]} {
    %c0 = arith.constant 0 : index
    %c0_0 = arith.constant 0 : index
    %0 = vector.load %arg1[%c0, %c0_0] : memref<8x14xf32, #tpu.memory_space<vmem>>, vector<8x14xf32>
    %1 = arith.truncf %0 : vector<8x14xf32> to vector<8x14xbf16>
    %c0_1 = arith.constant 0 : index
    %c0_2 = arith.constant 0 : index
    %2 = vector.load %arg2[%c0_1, %c0_2] : memref<14x128xbf16, #tpu.memory_space<vmem>>, vector<14x128xbf16>
    %cst = arith.constant dense<0.000000e+00> : vector<8x128xf32>
    %3 = tpu.matmul %1, %2, %cst {dimension_numbers = #tpu.dot_dimension_numbers<[1], [0], [0], [1], [0, 0, 1, 1], [], []>} : vector<8x14xbf16>, vector<14x128xbf16>, vector<8x128xf32> -> vector<8x128xf32>
    %c0_3 = arith.constant 0 : index
    %c0_4 = arith.constant 0 : index
    %4 = vector.load %arg3[%c0_3, %c0_4] : memref<1x128xf32, #tpu.memory_space<vmem>>, vector<1x128xf32>
    %5 = vector.broadcast %4 : vector<1x128xf32> to vector<8x128xf32>
    %6 = arith.addf %3, %5 : vector<8x128xf32>
    %cst_5 = arith.constant 0.000000e+00 : f32
    %7 = vector.broadcast %cst_5 : f32 to vector<8x128xf32>
    %8 = arith.cmpf ogt, %6, %7 : vector<8x128xf32>
    %cst_6 = arith.constant 5.000000e-01 : f32
    %9 = vector.broadcast %cst_6 : f32 to vector<8x128xf32>
    %10 = arith.mulf %9, %6 : vector<8x128xf32>
    %11 = arith.select %8, %6, %10 : vector<8x128xi1>, vector<8x128xf32>
    %12 = arith.truncf %11 : vector<8x128xf32> to vector<8x128xbf16>
    %c0_7 = arith.constant 0 : index
    %c0_8 = arith.constant 0 : index
    %13 = vector.load %arg4[%c0_7, %c0_8] : memref<128x64xbf16, #tpu.memory_space<vmem>>, vector<128x64xbf16>
    %cst_9 = arith.constant dense<0.000000e+00> : vector<8x64xf32>
    %14 = tpu.matmul %12, %13, %cst_9 {dimension_numbers = #tpu.dot_dimension_numbers<[1], [0], [0], [1], [0, 0, 1, 1], [], []>} : vector<8x128xbf16>, vector<128x64xbf16>, vector<8x64xf32> -> vector<8x64xf32>
    %c0_10 = arith.constant 0 : index
    %c0_11 = arith.constant 0 : index
    %15 = vector.load %arg5[%c0_10, %c0_11] : memref<1x64xf32, #tpu.memory_space<vmem>>, vector<1x64xf32>
    %16 = vector.broadcast %15 : vector<1x64xf32> to vector<8x64xf32>
    %17 = arith.addf %14, %16 : vector<8x64xf32>
    %cst_12 = arith.constant 0.000000e+00 : f32
    %18 = vector.broadcast %cst_12 : f32 to vector<8x64xf32>
    %19 = arith.cmpf ogt, %17, %18 : vector<8x64xf32>
    %cst_13 = arith.constant 5.000000e-01 : f32
    %20 = vector.broadcast %cst_13 : f32 to vector<8x64xf32>
    %21 = arith.mulf %20, %17 : vector<8x64xf32>
    %22 = arith.select %19, %17, %21 : vector<8x64xi1>, vector<8x64xf32>
    %23 = arith.truncf %22 : vector<8x64xf32> to vector<8x64xbf16>
    %c0_14 = arith.constant 0 : index
    %c0_15 = arith.constant 0 : index
    %24 = vector.load %arg6[%c0_14, %c0_15] : memref<64x32xbf16, #tpu.memory_space<vmem>>, vector<64x32xbf16>
    %cst_16 = arith.constant dense<0.000000e+00> : vector<8x32xf32>
    %25 = tpu.matmul %23, %24, %cst_16 {dimension_numbers = #tpu.dot_dimension_numbers<[1], [0], [0], [1], [0, 0, 1, 1], [], []>} : vector<8x64xbf16>, vector<64x32xbf16>, vector<8x32xf32> -> vector<8x32xf32>
    %c0_17 = arith.constant 0 : index
    %c0_18 = arith.constant 0 : index
    %26 = vector.load %arg7[%c0_17, %c0_18] : memref<1x32xf32, #tpu.memory_space<vmem>>, vector<1x32xf32>
    %27 = vector.broadcast %26 : vector<1x32xf32> to vector<8x32xf32>
    %28 = arith.addf %25, %27 : vector<8x32xf32>
    %cst_19 = arith.constant 0.000000e+00 : f32
    %29 = vector.broadcast %cst_19 : f32 to vector<8x32xf32>
    %30 = arith.cmpf ogt, %28, %29 : vector<8x32xf32>
    %cst_20 = arith.constant 5.000000e-01 : f32
    %31 = vector.broadcast %cst_20 : f32 to vector<8x32xf32>
    %32 = arith.mulf %31, %28 : vector<8x32xf32>
    %33 = arith.select %30, %28, %32 : vector<8x32xi1>, vector<8x32xf32>
    %34 = arith.truncf %33 : vector<8x32xf32> to vector<8x32xbf16>
    %c0_21 = arith.constant 0 : index
    %c0_22 = arith.constant 0 : index
    %35 = vector.load %arg8[%c0_21, %c0_22] : memref<8x32xbf16, #tpu.memory_space<vmem>>, vector<8x32xbf16>
    tpu.vector_store %arg8[%c0_21, %c0_22], %34 {strides = array<i32>} : memref<8x32xbf16, #tpu.memory_space<vmem>>, vector<8x32xbf16>,
    %cst_23 = arith.constant dense<0.000000e+00> : vector<32xf32>
    %36 = vector.multi_reduction <add>, %33, %cst_23 [0] : vector<8x32xf32> to vector<32xf32>
    %37 = vector.shape_cast %36 : vector<32xf32> to vector<1x32xf32>
    %38 = vector.shape_cast %37 : vector<1x32xf32> to vector<1x1x32xf32>
    %c0_24 = arith.constant 0 : index
    %c0_25 = arith.constant 0 : index
    %c0_26 = arith.constant 0 : index
    %39 = vector.load %arg9[%c0_24, %c0_25, %c0_26] : memref<1x1x32xf32, #tpu.memory_space<vmem>>, vector<1x1x32xf32>
    tpu.vector_store %arg9[%c0_24, %c0_25, %c0_26], %38 {strides = array<i32>} : memref<1x1x32xf32, #tpu.memory_space<vmem>>, vector<1x1x32xf32>,
    %40 = arith.mulf %33, %33 : vector<8x32xf32>
    %cst_27 = arith.constant dense<0.000000e+00> : vector<32xf32>
    %41 = vector.multi_reduction <add>, %40, %cst_27 [0] : vector<8x32xf32> to vector<32xf32>
    %42 = vector.shape_cast %41 : vector<32xf32> to vector<1x32xf32>
    %43 = vector.shape_cast %42 : vector<1x32xf32> to vector<1x1x32xf32>
    %c0_28 = arith.constant 0 : index
    %c0_29 = arith.constant 0 : index
    %c0_30 = arith.constant 0 : index
    %44 = vector.load %arg10[%c0_28, %c0_29, %c0_30] : memref<1x1x32xf32, #tpu.memory_space<vmem>>, vector<1x1x32xf32>
    tpu.vector_store %arg10[%c0_28, %c0_29, %c0_30], %43 {strides = array<i32>} : memref<1x1x32xf32, #tpu.memory_space<vmem>>, vector<1x1x32xf32>,
    return
  }
  func.func @transform_0(%arg0: i32) -> (i32, i32) {
    %c0_i32 = arith.constant 0 : i32
    %c0_i32_0 = arith.constant 0 : i32
    return %arg0, %c0_i32 : i32, i32
  }
  func.func @transform_1(%arg0: i32) -> (i32, i32) {
    %c0_i32 = arith.constant 0 : i32
    %c0_i32_0 = arith.constant 0 : i32
    %c0_i32_1 = arith.constant 0 : i32
    return %c0_i32, %c0_i32_0 : i32, i32
  }
  func.func @transform_2(%arg0: i32) -> (i32, i32) {
    %c0_i32 = arith.constant 0 : i32
    %c0_i32_0 = arith.constant 0 : i32
    %c0_i32_1 = arith.constant 0 : i32
    return %c0_i32, %c0_i32_0 : i32, i32
  }
  func.func @transform_3(%arg0: i32) -> (i32, i32) {
    %c0_i32 = arith.constant 0 : i32
    %c0_i32_0 = arith.constant 0 : i32
    %c0_i32_1 = arith.constant 0 : i32
    return %c0_i32, %c0_i32_0 : i32, i32
  }
  func.func @transform_4(%arg0: i32) -> (i32, i32) {
    %c0_i32 = arith.constant 0 : i32
    %c0_i32_0 = arith.constant 0 : i32
    %c0_i32_1 = arith.constant 0 : i32
    return %c0_i32, %c0_i32_0 : i32, i32
  }
  func.func @transform_5(%arg0: i32) -> (i32, i32) {
    %c0_i32 = arith.constant 0 : i32
    %c0_i32_0 = arith.constant 0 : i32
    %c0_i32_1 = arith.constant 0 : i32
    return %c0_i32, %c0_i32_0 : i32, i32
  }
  func.func @transform_6(%arg0: i32) -> (i32, i32) {
    %c0_i32 = arith.constant 0 : i32
    %c0_i32_0 = arith.constant 0 : i32
    %c0_i32_1 = arith.constant 0 : i32
    return %c0_i32, %c0_i32_0 : i32, i32
  }
  func.func @transform_7(%arg0: i32) -> (i32, i32) {
    %c0_i32 = arith.constant 0 : i32
    %c0_i32_0 = arith.constant 0 : i32
    return %arg0, %c0_i32 : i32, i32
  }
  func.func @transform_8(%arg0: i32) -> (i32, i32, i32) {
    %c0_i32 = arith.constant 0 : i32
    %c0_i32_0 = arith.constant 0 : i32
    %c0_i32_1 = arith.constant 0 : i32
    return %arg0, %c0_i32, %c0_i32_0 : i32, i32, i32
  }
  func.func @transform_9(%arg0: i32) -> (i32, i32, i32) {
    %c0_i32 = arith.constant 0 : i32
    %c0_i32_0 = arith.constant 0 : i32
    %c0_i32_1 = arith.constant 0 : i32
    return %arg0, %c0_i32, %c0_i32_0 : i32, i32, i32
  }
}

</mosaic_0001>

<llo_original>
// kernel: tpu_custom_call.1
$region0: #{tpu_custom_call.1}
  #allocation0 [shape = 'u32[]', space=smem, size = 0x4, offset = 0x4, fixed_abs, tag = 'smem constant byte address 0x4 - core index']
  #allocation1 [shape = 'u32[144,128]{1,0:T(1,128)}', space=vmem, size = 0x12000, scoped, tag = 'internal scratch']
  %s0 = inlined_call_operand.hbm [shape: f32[8,14], index: 0, kind: input, shape index: {}]
  %s1 = inlined_call_operand.hbm [shape: bf16[14,128], index: 1, kind: input, shape index: {}]
  %s2 = inlined_call_operand.hbm [shape: f32[1,128], index: 2, kind: input, shape index: {}]
  %s3 = inlined_call_operand.hbm [shape: bf16[128,64], index: 3, kind: input, shape index: {}]
  %s4 = inlined_call_operand.hbm [shape: f32[1,64], index: 4, kind: input, shape index: {}]
  %s5 = inlined_call_operand.hbm [shape: bf16[64,32], index: 5, kind: input, shape index: {}]
  %s6 = inlined_call_operand.hbm [shape: f32[1,32], index: 6, kind: input, shape index: {}]
  %s7 = inlined_call_operand.hbm [shape: bf16[8,32], index: 7, kind: output, shape index: {0}]
  %s8 = inlined_call_operand.hbm [shape: f32[1,1,32], index: 8, kind: output, shape index: {1}]
  %s9 = inlined_call_operand.hbm [shape: f32[1,1,32], index: 9, kind: output, shape index: {2}]
  %10 = xla_tuple %s7, %s8, %s9
  %s11 = sld [smem:[#allocation0]]
  $region82: #{tpu_custom_call.1} parent=0
    _
  %s13 = ssub.s32 1, %s11
  %s14 = scalar_select 0, %s13, %s11
  $region1: #{tpu_custom_call.1} parent=0
    #allocation2 [shape = 'u8[4096]{0}', space=vmem, size = 0x1000, scoped, tag = 'input window, operand 0, single buffered']
    #allocation3 [shape = 's32[1]{0}', space=sflag, size = 0x4, scoped, tag = 'scoped memory for tpu_custom_call.1']
    #allocation4 [shape = 's32[1]{0}', space=sflag, size = 0x4, scoped, tag = 'scoped memory for tpu_custom_call.1']
    #allocation5 [shape = 'u8[4096]{0}', space=vmem, size = 0x1000, scoped, tag = 'input window, operand 1, single buffered']
    #allocation6 [shape = 's32[1]{0}', space=sflag, size = 0x4, scoped, tag = 'scoped memory for tpu_custom_call.1']
    #allocation7 [shape = 'u8[512]{0}', space=vmem, size = 0x400, scoped, tag = 'input window, operand 2, single buffered']
    #allocation8 [shape = 'u8[32768]{0}', space=vmem, size = 0x8000, scoped, tag = 'input window, operand 3, single buffered']
    #allocation9 [shape = 's32[1]{0}', space=sflag, size = 0x4, scoped, tag = 'scoped memory for tpu_custom_call.1']
    #allocation10 [shape = 'u8[512]{0}', space=vmem, size = 0x400, scoped, tag = 'input window, operand 4, single buffered']
    #allocation11 [shape = 'u8[16384]{0}', space=vmem, size = 0x4000, scoped, tag = 'input window, operand 5, single buffered']
    #allocation12 [shape = 's32[1]{0}', space=sflag, size = 0x4, scoped, tag = 'scoped memory for tpu_custom_call.1']
    #allocation13 [shape = 'u8[512]{0}', space=vmem, size = 0x400, scoped, tag = 'input window, operand 6, single buffered']
    #allocation14 [shape = 'u8[2048]{0}', space=vmem, size = 0x800, scoped, tag = 'output window, operand 0, single buffered']
    #allocation15 [shape = 'u8[512]{0}', space=vmem, size = 0x400, scoped, tag = 'output window, operand 1, single buffered']
    #allocation16 [shape = 's32[1]{0}', space=sflag, size = 0x4, scoped, tag = 'scoped memory for tpu_custom_call.1']
    #allocation17 [shape = 'u8[512]{0}', space=vmem, size = 0x400, scoped, tag = 'output window, operand 2, single buffered']
    %15 = vsyncpa [#allocation3], 0
    %16 = vsyncpa [#allocation6], 0
    %17 = vsyncpa [#allocation9], 0
    %18 = vsyncpa [#allocation12], 0
    %19 = vsyncpa [#allocation4], 0
    %20 = vsyncpa [#allocation16], 0
    // Predicated region
    $region2: #{tpu_custom_call.1} parent=1 // pred_check
      _
    $region3: #{tpu_custom_call.1} parent=1 // pred_check_branch
      %22 = sbr.rel (0) target = $region5
    $region4: #{tpu_custom_call.1} parent=1 // pred_region
      %s24 = ssub.s32 128, 128
      %25 = vsyncadd [#allocation3], %s24
      %s27 = sshll.u32 [#allocation2], 4
      %s28 = int_to_ptr.vmem [resolvable:$true] %s27
      %30 = dma.hbm_to_vmem [thread:$0]  %s0, 128, %s28, [#allocation3]
    $region5: #{tpu_custom_call.1} parent=1 // pred_fallthru
      _
    // Predicated region
    $region6: #{tpu_custom_call.1} parent=1 // pred_check
      _
    $region7: #{tpu_custom_call.1} parent=1 // pred_check_branch
      %32 = sbr.rel (0) target = $region9
    $region8: #{tpu_custom_call.1} parent=1 // pred_region
      %s34 = ssub.s32 128, 128
      %35 = vsyncadd [#allocation6], %s34
      %s36 = sshll.u32 [#allocation5], 4
      %s37 = int_to_ptr.vmem [resolvable:$true] %s36
      %42 = dma.hbm_to_vmem [thread:$0]  %s1, 128, %s37, [#allocation6], 64, 64, 4
    $region9: #{tpu_custom_call.1} parent=1 // pred_fallthru
      _
    // Predicated region
    $region10: #{tpu_custom_call.1} parent=1 // pred_check
      _
    $region11: #{tpu_custom_call.1} parent=1 // pred_check_branch
      %44 = sbr.rel (0) target = $region13
    $region12: #{tpu_custom_call.1} parent=1 // pred_region
      %s46 = ssub.s32 16, 16
      %47 = vsyncadd [#allocation6], %s46
      %s49 = sshll.u32 [#allocation7], 4
      %s50 = int_to_ptr.vmem [resolvable:$true] %s49
      %52 = dma.hbm_to_vmem [thread:$0]  %s2, 16, %s50, [#allocation6]
    $region13: #{tpu_custom_call.1} parent=1 // pred_fallthru
      _
    // Predicated region
    $region14: #{tpu_custom_call.1} parent=1 // pred_check
      _
    $region15: #{tpu_custom_call.1} parent=1 // pred_check_branch
      %54 = sbr.rel (0) target = $region17
    $region16: #{tpu_custom_call.1} parent=1 // pred_region
      %s56 = ssub.s32 1024, 1024
      %57 = vsyncadd [#allocation9], %s56
      %s58 = sshll.u32 [#allocation8], 4
      %s59 = int_to_ptr.vmem [resolvable:$true] %s58
      %64 = dma.hbm_to_vmem [thread:$0]  %s3, 1024, %s59, [#allocation9], 64, 64, 4
    $region17: #{tpu_custom_call.1} parent=1 // pred_fallthru
      _
    // Predicated region
    $region18: #{tpu_custom_call.1} parent=1 // pred_check
      _
    $region19: #{tpu_custom_call.1} parent=1 // pred_check_branch
      %66 = sbr.rel (0) target = $region21
    $region20: #{tpu_custom_call.1} parent=1 // pred_region
      %s68 = ssub.s32 16, 16
      %69 = vsyncadd [#allocation9], %s68
      %s71 = sshll.u32 [#allocation10], 4
      %s72 = int_to_ptr.vmem [resolvable:$true] %s71
      %74 = dma.hbm_to_vmem [thread:$0]  %s4, 16, %s72, [#allocation9]
    $region21: #{tpu_custom_call.1} parent=1 // pred_fallthru
      _
    // Predicated region
    $region22: #{tpu_custom_call.1} parent=1 // pred_check
      _
    $region23: #{tpu_custom_call.1} parent=1 // pred_check_branch
      %76 = sbr.rel (0) target = $region25
    $region24: #{tpu_custom_call.1} parent=1 // pred_region
      %s78 = ssub.s32 512, 512
      %79 = vsyncadd [#allocation12], %s78
      %s80 = sshll.u32 [#allocation11], 4
      %s81 = int_to_ptr.vmem [resolvable:$true] %s80
      %86 = dma.hbm_to_vmem [thread:$0]  %s5, 512, %s81, [#allocation12], 64, 64, 4
    $region25: #{tpu_custom_call.1} parent=1 // pred_fallthru
      _
    // Predicated region
    $region26: #{tpu_custom_call.1} parent=1 // pred_check
      _
    $region27: #{tpu_custom_call.1} parent=1 // pred_check_branch
      %88 = sbr.rel (0) target = $region29
    $region28: #{tpu_custom_call.1} parent=1 // pred_region
      %s90 = ssub.s32 16, 16
      %91 = vsyncadd [#allocation12], %s90
      %s93 = sshll.u32 [#allocation13], 4
      %s94 = int_to_ptr.vmem [resolvable:$true] %s93
      %96 = dma.hbm_to_vmem [thread:$0]  %s6, 16, %s94, [#allocation12]
    $region29: #{tpu_custom_call.1} parent=1 // pred_fallthru
      _
    // Predicated region
    $region30: #{tpu_custom_call.1} parent=1 // pred_check
      _
    $region31: #{tpu_custom_call.1} parent=1 // pred_check_branch
      %98 = sbr.rel (0) target = $region33
    $region32: #{tpu_custom_call.1} parent=1 // pred_region
      %99 = dma.done [#allocation3], 128
    $region33: #{tpu_custom_call.1} parent=1 // pred_fallthru
      _
    // Predicated region
    $region34: #{tpu_custom_call.1} parent=1 // pred_check
      _
    $region35: #{tpu_custom_call.1} parent=1 // pred_check_branch
      %101 = sbr.rel (0) target = $region37
    $region36: #{tpu_custom_call.1} parent=1 // pred_region
      %102 = dma.done [#allocation6], 128
    $region37: #{tpu_custom_call.1} parent=1 // pred_fallthru
      _
    // Predicated region
    $region38: #{tpu_custom_call.1} parent=1 // pred_check
      _
    $region39: #{tpu_custom_call.1} parent=1 // pred_check_branch
      %104 = sbr.rel (0) target = $region41
    $region40: #{tpu_custom_call.1} parent=1 // pred_region
      %105 = dma.done [#allocation6], 16
    $region41: #{tpu_custom_call.1} parent=1 // pred_fallthru
      _
    // Predicated region
    $region42: #{tpu_custom_call.1} parent=1 // pred_check
      _
    $region43: #{tpu_custom_call.1} parent=1 // pred_check_branch
      %107 = sbr.rel (0) target = $region45
    $region44: #{tpu_custom_call.1} parent=1 // pred_region
      %108 = dma.done [#allocation9], 1024
    $region45: #{tpu_custom_call.1} parent=1 // pred_fallthru
      _
    // Predicated region
    $region46: #{tpu_custom_call.1} parent=1 // pred_check
      _
    $region47: #{tpu_custom_call.1} parent=1 // pred_check_branch
      %110 = sbr.rel (0) target = $region49
    $region48: #{tpu_custom_call.1} parent=1 // pred_region
      %111 = dma.done [#allocation9], 16
    $region49: #{tpu_custom_call.1} parent=1 // pred_fallthru
      _
    // Predicated region
    $region50: #{tpu_custom_call.1} parent=1 // pred_check
      _
    $region51: #{tpu_custom_call.1} parent=1 // pred_check_branch
      %113 = sbr.rel (0) target = $region53
    $region52: #{tpu_custom_call.1} parent=1 // pred_region
      %114 = dma.done [#allocation12], 512
    $region53: #{tpu_custom_call.1} parent=1 // pred_fallthru
      _
    // Predicated region
    $region54: #{tpu_custom_call.1} parent=1 // pred_check
      _
    $region55: #{tpu_custom_call.1} parent=1 // pred_check_branch
      %116 = sbr.rel (0) target = $region57
    $region56: #{tpu_custom_call.1} parent=1 // pred_region
      %117 = dma.done [#allocation12], 16
    $region57: #{tpu_custom_call.1} parent=1 // pred_fallthru
      _
    %v119 = vld [vmem:[#allocation2] sm:$0xff]
    %v120 = vpack.c.bf16 %v119, %v119
    %v121 = vld [vmem:[#allocation5] sm:$0xf]
    %v122 = vld [vmem:[#allocation5 + $0x4] sm:$0x7]
    %v123 = vld [vmem:[#allocation7] sm:$0x1]
    %v125 = vlaneseq
    %v126 = vshrl.u32 %v125, 7
    %v127 = vsub.s32 0, %v126
    %v128 = vrot.slane %v123, %v127
    %v132 = vunpack.c.l.b16 %v121
    %v133 = vunpack.c.l.b16 %v122
    %v134 = vpack.c.b16 %v133, %v132
    %vm135 = vcmask 113664
    %v137 = vsel %vm135, %v120, 0
    %vm139 = vcmask 1046528
    %v141 = vsel %vm139, %v134, 0
    %143 = vmatprep.subr.bf16.mxu0 0
    %144 = vmatpush1.bf16.msra.mxu0 %v141
    %145 = vmatprep.subr.bf16.mxu0 0
    %146 = vmatpush1.bf16.msra.mxu0 0
    %147 = vmatprep.subr.bf16.mxu0 0
    %148 = vmatpush1.bf16.msra.mxu0 0
    %149 = vmatprep.subr.bf16.mxu0 0
    %150 = vmatpush1.bf16.msra.mxu0 0
    %151 = vmatprep.subr.bf16.mxu0 0
    %152 = vmatpush1.bf16.msra.mxu0 0
    %153 = vmatprep.subr.bf16.mxu0 0
    %154 = vmatpush1.bf16.msra.mxu0 0
    %155 = vmatprep.subr.bf16.mxu0 0
    %156 = vmatpush1.bf16.msra.mxu0 0
    %157 = vmatprep.subr.bf16.mxu0 0
    %158 = vmatpush1.bf16.msra.mxu0 0
    %159 = vmatprep.subr.bf16.mxu0 0
    %160 = vmatpush1.bf16.msra.mxu0 0
    %161 = vmatprep.subr.bf16.mxu0 0
    %162 = vmatpush1.bf16.msra.mxu0 0
    %163 = vmatprep.subr.bf16.mxu0 0
    %164 = vmatpush1.bf16.msra.mxu0 0
    %165 = vmatprep.subr.bf16.mxu0 0
    %166 = vmatpush1.bf16.msra.mxu0 0
    %167 = vmatprep.subr.bf16.mxu0 0
    %168 = vmatpush1.bf16.msra.mxu0 0
    %169 = vmatprep.subr.bf16.mxu0 0
    %170 = vmatpush1.bf16.msra.mxu0 0
    %171 = vmatprep.subr.bf16.mxu0 0
    %172 = vmatpush1.bf16.msra.mxu0 0
    %173 = vmatprep.subr.bf16.mxu0 0
    %174 = vmatpush1.bf16.msra.mxu0 0
    %175 = vmatprep.mubr.bf16.mxu0 0
    %176 = vmatmul.mubr.bf16.gmra.mrb[0].mxu0 %v137
    %v177 = vpop.f32.mrb[0].mxu0
    %v178 = vadd.f32 %v128, %v177
    %v179 = vpop.f32.mrb[0].mxu0
    %v180 = vpop.f32.mrb[0].mxu0
    %v181 = vpop.f32.mrb[0].mxu0
    %182 = vdwg.mxu0
    %vm183 = vcmp.gt.f32.partialorder %v178, 0.0
    %v184 = vmul.f32 %v178, 0.5
    %v185 = vsel %vm183, %v178, %v184
    %v186 = vpack.c.bf16 %v185, %v185
    %v187 = vld [vmem:[#allocation8] sm:$0xf]
    %v188 = vld [vmem:[#allocation8 + $0x4] sm:$0xf]
    %v189 = vld [vmem:[#allocation8 + $0x8] sm:$0xf]
    %v190 = vld [vmem:[#allocation8 + $0xc] sm:$0xf]
    %v191 = vld [vmem:[#allocation8 + $0x10] sm:$0xf]
    %v192 = vld [vmem:[#allocation8 + $0x14] sm:$0xf]
    %v193 = vld [vmem:[#allocation8 + $0x18] sm:$0xf]
    %v194 = vld [vmem:[#allocation8 + $0x1c] sm:$0xf]
    %v195 = vld [vmem:[#allocation8 + $0x20] sm:$0xf]
    %v196 = vld [vmem:[#allocation8 + $0x24] sm:$0xf]
    %v197 = vld [vmem:[#allocation8 + $0x28] sm:$0xf]
    %v198 = vld [vmem:[#allocation8 + $0x2c] sm:$0xf]
    %v199 = vld [vmem:[#allocation8 + $0x30] sm:$0xf]
    %v200 = vld [vmem:[#allocation8 + $0x34] sm:$0xf]
    %v201 = vld [vmem:[#allocation8 + $0x38] sm:$0xf]
    %v202 = vld [vmem:[#allocation8 + $0x3c] sm:$0xf]
    %v203 = vld [vmem:[#allocation10] sm:$0x1]
    %v205 = vlaneseq
    %v206 = vshrl.u32 %v205, 7
    %v207 = vsub.s32 0, %v206
    %v208 = vrot.slane %v203, %v207
    %v226 = vunpack.c.l.b16 %v187
    %v227 = vunpack.c.l.b16 %v188
    %v228 = vunpack.c.l.b16 %v189
    %v229 = vunpack.c.l.b16 %v190
    %v230 = vunpack.c.l.b16 %v191
    %v231 = vunpack.c.l.b16 %v192
    %v232 = vunpack.c.l.b16 %v193
    %v233 = vunpack.c.l.b16 %v194
    %v234 = vunpack.c.l.b16 %v195
    %v235 = vunpack.c.l.b16 %v196
    %v236 = vunpack.c.l.b16 %v197
    %v237 = vunpack.c.l.b16 %v198
    %v238 = vunpack.c.l.b16 %v199
    %v239 = vunpack.c.l.b16 %v200
    %v240 = vunpack.c.l.b16 %v201
    %v241 = vunpack.c.l.b16 %v202
    %v242 = vpack.c.b16 %v227, %v226
    %v243 = vpack.c.b16 %v229, %v228
    %v244 = vpack.c.b16 %v231, %v230
    %v245 = vpack.c.b16 %v233, %v232
    %v246 = vpack.c.b16 %v235, %v234
    %v247 = vpack.c.b16 %v237, %v236
    %v248 = vpack.c.b16 %v239, %v238
    %v249 = vpack.c.b16 %v241, %v240
    %258 = vmatprep.subr.bf16.mxu0 0
    %259 = vmatpush1.bf16.msra.mxu0 %v242
    %260 = vmatprep.subr.bf16.mxu0 0
    %261 = vmatpush1.bf16.msra.mxu0 %v243
    %262 = vmatprep.subr.bf16.mxu0 0
    %263 = vmatpush1.bf16.msra.mxu0 %v244
    %264 = vmatprep.subr.bf16.mxu0 0
    %265 = vmatpush1.bf16.msra.mxu0 %v245
    %266 = vmatprep.subr.bf16.mxu0 0
    %267 = vmatpush1.bf16.msra.mxu0 %v246
    %268 = vmatprep.subr.bf16.mxu0 0
    %269 = vmatpush1.bf16.msra.mxu0 %v247
    %270 = vmatprep.subr.bf16.mxu0 0
    %271 = vmatpush1.bf16.msra.mxu0 %v248
    %272 = vmatprep.subr.bf16.mxu0 0
    %273 = vmatpush1.bf16.msra.mxu0 %v249
    %274 = vmatprep.subr.bf16.mxu0 0
    %275 = vmatpush1.bf16.msra.mxu0 0
    %276 = vmatprep.subr.bf16.mxu0 0
    %277 = vmatpush1.bf16.msra.mxu0 0
    %278 = vmatprep.subr.bf16.mxu0 0
    %279 = vmatpush1.bf16.msra.mxu0 0
    %280 = vmatprep.subr.bf16.mxu0 0
    %281 = vmatpush1.bf16.msra.mxu0 0
    %282 = vmatprep.subr.bf16.mxu0 0
    %283 = vmatpush1.bf16.msra.mxu0 0
    %284 = vmatprep.subr.bf16.mxu0 0
    %285 = vmatpush1.bf16.msra.mxu0 0
    %286 = vmatprep.subr.bf16.mxu0 0
    %287 = vmatpush1.bf16.msra.mxu0 0
    %288 = vmatprep.subr.bf16.mxu0 0
    %289 = vmatpush1.bf16.msra.mxu0 0
    %290 = vmatprep.mubr.bf16.mxu0 0
    %291 = vmatmul.mubr.bf16.gmra.mrb[0].mxu0 %v186
    %v292 = vpop.f32.mrb[0].mxu0
    %v293 = vadd.f32 %v208, %v292
    %v294 = vpop.f32.mrb[0].mxu0
    %v295 = vpop.f32.mrb[0].mxu0
    %v296 = vpop.f32.mrb[0].mxu0
    %297 = vdwg.mxu0
    %vm298 = vcmp.gt.f32.partialorder %v293, 0.0
    %v299 = vmul.f32 %v293, 0.5
    %v300 = vsel %vm298, %v293, %v299
    %v301 = vpack.c.bf16 %v300, %v300
    %v302 = vld [vmem:[#allocation11] sm:$0xf]
    %v303 = vld [vmem:[#allocation11 + $0x4] sm:$0xf]
    %v304 = vld [vmem:[#allocation11 + $0x8] sm:$0xf]
    %v305 = vld [vmem:[#allocation11 + $0xc] sm:$0xf]
    %v306 = vld [vmem:[#allocation11 + $0x10] sm:$0xf]
    %v307 = vld [vmem:[#allocation11 + $0x14] sm:$0xf]
    %v308 = vld [vmem:[#allocation11 + $0x18] sm:$0xf]
    %v309 = vld [vmem:[#allocation11 + $0x1c] sm:$0xf]
    %v310 = vld [vmem:[#allocation13] sm:$0x1]
    %v312 = vlaneseq
    %v313 = vshrl.u32 %v312, 7
    %v314 = vsub.s32 0, %v313
    %v315 = vrot.slane %v310, %v314
    %v325 = vunpack.c.l.b16 %v302
    %v326 = vunpack.c.l.b16 %v303
    %v327 = vunpack.c.l.b16 %v304
    %v328 = vunpack.c.l.b16 %v305
    %v329 = vunpack.c.l.b16 %v306
    %v330 = vunpack.c.l.b16 %v307
    %v331 = vunpack.c.l.b16 %v308
    %v332 = vunpack.c.l.b16 %v309
    %v333 = vpack.c.b16 %v326, %v325
    %v334 = vpack.c.b16 %v328, %v327
    %v335 = vpack.c.b16 %v330, %v329
    %v336 = vpack.c.b16 %v332, %v331
    %vm341 = vcmask 523264
    %v343 = vsel %vm341, %v301, 0
    %345 = vmatprep.subr.bf16.mxu0 0
    %346 = vmatpush1.bf16.msra.mxu0 %v333
    %347 = vmatprep.subr.bf16.mxu0 0
    %348 = vmatpush1.bf16.msra.mxu0 %v334
    %349 = vmatprep.subr.bf16.mxu0 0
    %350 = vmatpush1.bf16.msra.mxu0 %v335
    %351 = vmatprep.subr.bf16.mxu0 0
    %352 = vmatpush1.bf16.msra.mxu0 %v336
    %353 = vmatprep.subr.bf16.mxu0 0
    %354 = vmatpush1.bf16.msra.mxu0 0
    %355 = vmatprep.subr.bf16.mxu0 0
    %356 = vmatpush1.bf16.msra.mxu0 0
    %357 = vmatprep.subr.bf16.mxu0 0
    %358 = vmatpush1.bf16.msra.mxu0 0
    %359 = vmatprep.subr.bf16.mxu0 0
    %360 = vmatpush1.bf16.msra.mxu0 0
    %361 = vmatprep.subr.bf16.mxu0 0
    %362 = vmatpush1.bf16.msra.mxu0 0
    %363 = vmatprep.subr.bf16.mxu0 0
    %364 = vmatpush1.bf16.msra.mxu0 0
    %365 = vmatprep.subr.bf16.mxu0 0
    %366 = vmatpush1.bf16.msra.mxu0 0
    %367 = vmatprep.subr.bf16.mxu0 0
    %368 = vmatpush1.bf16.msra.mxu0 0
    %369 = vmatprep.subr.bf16.mxu0 0
    %370 = vmatpush1.bf16.msra.mxu0 0
    %371 = vmatprep.subr.bf16.mxu0 0
    %372 = vmatpush1.bf16.msra.mxu0 0
    %373 = vmatprep.subr.bf16.mxu0 0
    %374 = vmatpush1.bf16.msra.mxu0 0
    %375 = vmatprep.subr.bf16.mxu0 0
    %376 = vmatpush1.bf16.msra.mxu0 0
    %377 = vmatprep.mubr.bf16.mxu0 0
    %378 = vmatmul.mubr.bf16.gmra.mrb[0].mxu0 %v343
    %v379 = vpop.f32.mrb[0].mxu0
    %v380 = vadd.f32 %v315, %v379
    %v381 = vpop.f32.mrb[0].mxu0
    %v382 = vpop.f32.mrb[0].mxu0
    %v383 = vpop.f32.mrb[0].mxu0
    %384 = vdwg.mxu0
    %vm385 = vcmp.gt.f32.partialorder %v380, 0.0
    %v386 = vmul.f32 %v380, 0.5
    %v387 = vsel %vm385, %v380, %v386
    %v388 = vpack.c.bf16 %v387, %v387
    %vm389 = vcmask 257024
    %390 = vst.msk [vmem:[#allocation14] sm:$0xf] %vm389, %v388
    %vm391 = vcmask 261120
    %v392 = vsel %vm391, %v387, 0.0
    %v393 = vrot.slane %v392, 4
    %v394 = vadd.f32 %v392, %v393
    %v395 = vrot.slane %v394, 2
    %v396 = vadd.f32 %v394, %v395
    %v397 = vrot.slane %v396, 1
    %v398 = vadd.f32 %v396, %v397
    %vm399 = vcmask 253952
    %400 = vst.msk [vmem:[#allocation15] sm:$0x1] %vm399, %v398
    %v401 = vmul.f32 %v387, %v387
    %v402 = vsel %vm391, %v401, 0.0
    %v403 = vrot.slane %v402, 4
    %v404 = vadd.f32 %v402, %v403
    %v405 = vrot.slane %v404, 2
    %v406 = vadd.f32 %v404, %v405
    %v407 = vrot.slane %v406, 1
    %v408 = vadd.f32 %v406, %v407
    %409 = vst.msk [vmem:[#allocation17] sm:$0x1] %vm399, %v408
    // Predicated region
    $region58: #{tpu_custom_call.1} parent=1 // pred_check
      _
    $region59: #{tpu_custom_call.1} parent=1 // pred_check_branch
      %411 = sbr.rel (0) target = $region61
    $region60: #{tpu_custom_call.1} parent=1 // pred_region
      %s413 = ssub.s32 64, 64
      %414 = vsyncadd [#allocation4], %s413
      %s416 = sshll.u32 [#allocation14], 4
      %s417 = int_to_ptr.vmem [resolvable:$true] %s416
      %419 = dma.vmem_to_hbm [thread:$0]  %s417, 64, %s7, [#allocation4]
    $region61: #{tpu_custom_call.1} parent=1 // pred_fallthru
      _
    // Predicated region
    $region62: #{tpu_custom_call.1} parent=1 // pred_check
      _
    $region63: #{tpu_custom_call.1} parent=1 // pred_check_branch
      %421 = sbr.rel (0) target = $region65
    $region64: #{tpu_custom_call.1} parent=1 // pred_region
      %s423 = ssub.s32 16, 16
      %424 = vsyncadd [#allocation16], %s423
      %s426 = sshll.u32 [#allocation15], 4
      %s427 = int_to_ptr.vmem [resolvable:$true] %s426
      %429 = dma.vmem_to_hbm [thread:$0]  %s427, 16, %s8, [#allocation16]
    $region65: #{tpu_custom_call.1} parent=1 // pred_fallthru
      _
    // Predicated region
    $region66: #{tpu_custom_call.1} parent=1 // pred_check
      _
    $region67: #{tpu_custom_call.1} parent=1 // pred_check_branch
      %431 = sbr.rel (0) target = $region69
    $region68: #{tpu_custom_call.1} parent=1 // pred_region
      %s433 = ssub.s32 16, 16
      %434 = vsyncadd [#allocation16], %s433
      %s436 = sshll.u32 [#allocation17], 4
      %s437 = int_to_ptr.vmem [resolvable:$true] %s436
      %439 = dma.vmem_to_hbm [thread:$0]  %s437, 16, %s9, [#allocation16]
    $region69: #{tpu_custom_call.1} parent=1 // pred_fallthru
      _
    // Predicated region
    $region70: #{tpu_custom_call.1} parent=1 // pred_check
      _
    $region71: #{tpu_custom_call.1} parent=1 // pred_check_branch
      %441 = sbr.rel (0) target = $region73
    $region72: #{tpu_custom_call.1} parent=1 // pred_region
      %442 = dma.done [#allocation4], 64
    $region73: #{tpu_custom_call.1} parent=1 // pred_fallthru
      _
    // Predicated region
    $region74: #{tpu_custom_call.1} parent=1 // pred_check
      _
    $region75: #{tpu_custom_call.1} parent=1 // pred_check_branch
      %444 = sbr.rel (0) target = $region77
    $region76: #{tpu_custom_call.1} parent=1 // pred_region
      %445 = dma.done [#allocation16], 16
    $region77: #{tpu_custom_call.1} parent=1 // pred_fallthru
      _
    // Predicated region
    $region78: #{tpu_custom_call.1} parent=1 // pred_check
      _
    $region79: #{tpu_custom_call.1} parent=1 // pred_check_branch
      %447 = sbr.rel (0) target = $region81
    $region80: #{tpu_custom_call.1} parent=1 // pred_region
      %448 = dma.done [#allocation16], 16
    $region81: #{tpu_custom_call.1} parent=1 // pred_fallthru
      _
    %449 = vsyncpa [#allocation3], 1
    %450 = vsyncpa [#allocation6], 1
    %451 = vsyncpa [#allocation9], 1
    %452 = vsyncpa [#allocation12], 1
    %453 = vsyncpa [#allocation4], 1
    %454 = vsyncpa [#allocation16], 1

</llo_original>
